<compile_context>
chip_gen: v7x
topology: tpu7x:2x2x1
jax: 0.10.0
libtpu: 0.0.40
codegen_flags: <defaults>
</compile_context>

<pallas_src>
import math

import jax
import jax.numpy as jnp
from jax import lax
from jax.experimental import pallas as pl
from jax.experimental.pallas import tpu as pltpu

EMB_DIM = 32
H1 = 128
H2 = 64
BN_EPS = 1e-5
LN_EPS = 1e-5


def _round_up(n, m):
    return ((n + m - 1) // m) * m


def _choose_tiling(B, block_rows):
    """Lane-aligned batch tiling: TB, B_pad multiples of 128; >=2 grid steps when possible."""
    b_pad128 = _round_up(B, 128)
    tb = min(_round_up(block_rows, 128), b_pad128)
    n = -(-b_pad128 // tb)                       # ceil div
    if n < 2 and b_pad128 >= 256:
        n = 2                                    # keep both v7x TensorCores busy
    tb = _round_up(-(-b_pad128 // n), 128)
    return tb, n * tb, n


def discriminator_kernel(
    x_ref,                  # (TB, 32)   streamed batch tile
    w1_ref, b1_ref,         # (32, 128), (1, 128)  -- eval BN folded in
    w2_ref, b2_ref,         # (128, 64), (1, 64)
    ln_g_ref, ln_b_ref,     # (1, 64), (1, 64)
    w3_ref,                 # (1, 64)
    b3_ref,                 # (1,) SMEM scalar
    o_ref,                  # (1, TB)    lane-dense probabilities
):
    x = x_ref[...]

    # ---- Linear(32 -> 128) with eval-mode BatchNorm1d(128) pre-folded ----
    h1 = jnp.dot(x, w1_ref[...], preferred_element_type=jnp.float32) + b1_ref[...]
    # ---- LeakyReLU(0.2); Dropout(0.3) is identity in eval ----
    h1 = jnp.maximum(h1, 0.2 * h1)

    # ---- Linear(128 -> 64) ----
    h2 = jnp.dot(h1, w2_ref[...], preferred_element_type=jnp.float32) + b2_ref[...]

    # ---- LayerNorm(64): one-pass stats, rsqrt fused with gamma into one scale ----
    mu = jnp.mean(h2, axis=-1, keepdims=True)
    ms = jnp.mean(h2 * h2, axis=-1, keepdims=True)
    r = lax.rsqrt(jnp.maximum(ms - mu * mu, 0.0) + LN_EPS)      # (TB, 1)
    h2 = (h2 - mu) * (r * ln_g_ref[...]) + ln_b_ref[...]
    # ---- LeakyReLU(0.2); Dropout identity ----
    h2 = jnp.maximum(h2, 0.2 * h2)

    # ---- Linear(64 -> 1) + Sigmoid, lane-dense, no explicit transpose ----
    # contract feature axis of (1,64) with feature axis of (TB,64) -> (1, TB)
    logits = lax.dot_general(
        w3_ref[...], h2,
        dimension_numbers=(((1,), (1,)), ((), ())),
        preferred_element_type=jnp.float32,
    ) + b3_ref[0]
    o_ref[...] = jax.nn.sigmoid(logits).astype(o_ref.dtype)


def discriminator_forward(x, params, *, block_rows=2048):
    """x: (B, 32) float32 -> (B, 1) float32 probabilities (eval-mode semantics)."""
    B = x.shape[0]
    TB, B_pad, num_blocks = _choose_tiling(B, block_rows)
    xp = x if B_pad == B else jnp.pad(x, ((0, B_pad - B), (0, 0)))

    # Fold eval-mode BatchNorm1d (running stats) into the first Linear (host-side, once).
    scale = params["bn_g"] * lax.rsqrt(params["bn_v"] + BN_EPS)        # (1, 128)
    w1f = params["w1"] * scale                                         # (32, 128)
    b1f = (params["b1"] - params["bn_m"]) * scale + params["bn_b"]     # (1, 128)
    w3r = params["w3"].reshape(1, H2)                                  # (1, 64)
    b3 = params["b3"].reshape(1)                                       # (1,) -> SMEM scalar

    def resident(a):
        # whole array as one block, constant index_map -> stays resident in VMEM
        shp = a.shape
        return pl.BlockSpec(shp, lambda i: (0,) * len(shp))

    weight_elems = (w1f.size + b1f.size + params["w2"].size + params["b2"].size
                    + params["ln_g"].size + params["ln_b"].size + w3r.size + b3.size)
    cost = pl.CostEstimate(
        flops=int(2 * B_pad * (EMB_DIM * H1 + H1 * H2 + H2)),
        transcendentals=int(2 * B_pad),                  # LN rsqrt + sigmoid
        bytes_accessed=int(4 * (xp.size + B_pad + weight_elems)),
    )

    out = pl.pallas_call(
        discriminator_kernel,
        out_shape=jax.ShapeDtypeStruct((1, B_pad), jnp.float32),
        grid=(num_blocks,),
        in_specs=[
            pl.BlockSpec((TB, EMB_DIM), lambda i: (i, 0)),   # streamed batch tile
            resident(w1f), resident(b1f),
            resident(params["w2"]), resident(params["b2"]),
            resident(params["ln_g"]), resident(params["ln_b"]),
            resident(w3r),
            pl.BlockSpec(memory_space=pltpu.MemorySpace.SMEM),  # b3 scalar
        ],
        out_specs=pl.BlockSpec((1, TB), lambda i: (0, i)),   # lane-dense output tile
        compiler_params=pltpu.CompilerParams(
            dimension_semantics=("parallel",),
            vmem_limit_bytes=48 * 1024 * 1024,   # headroom for big tiles on v5e's 16MiB default
        ),
        cost_estimate=cost,
    )(xp, w1f, b1f, params["w2"], params["b2"],
      params["ln_g"], params["ln_b"], w3r, b3)

    return out[0, :B, None]                                  # back to (B, 1)


def init_params(key):
    """Deterministic init mimicking PyTorch defaults (kaiming-uniform bounds)."""
    ks = jax.random.split(key, 6)

    def linear(kw, kb, fan_in, fan_out):
        bound = 1.0 / math.sqrt(fan_in)
        w = jax.random.uniform(kw, (fan_in, fan_out), jnp.float32, -bound, bound)
        b = jax.random.uniform(kb, (1, fan_out), jnp.float32, -bound, bound)
        return w, b

    w1, b1 = linear(ks[0], ks[1], EMB_DIM, H1)
    w2, b2 = linear(ks[2], ks[3], H1, H2)
    w3, b3 = linear(ks[4], ks[5], H2, 1)

    return dict(
        w1=w1, b1=b1,
        bn_g=jnp.ones((1, H1), jnp.float32),
        bn_b=jnp.zeros((1, H1), jnp.float32),
        bn_m=jnp.zeros((1, H1), jnp.float32),   # running_mean
        bn_v=jnp.ones((1, H1), jnp.float32),    # running_var
        w2=w2, b2=b2,
        ln_g=jnp.ones((1, H2), jnp.float32),
        ln_b=jnp.zeros((1, H2), jnp.float32),
        w3=w3.reshape(H2, 1), b3=b3.reshape(1, 1),
    )


def _reference(x, p):
    """Pure-JAX reference for sanity check (eval-mode semantics)."""
    h1 = x @ p["w1"] + p["b1"]
    h1 = (h1 - p["bn_m"]) / jnp.sqrt(p["bn_v"] + BN_EPS) * p["bn_g"] + p["bn_b"]
    h1 = jnp.where(h1 > 0, h1, 0.2 * h1)
    h2 = h1 @ p["w2"] + p["b2"]
    mu = h2.mean(-1, keepdims=True)
    var = ((h2 - mu) ** 2).mean(-1, keepdims=True)
    h2 = (h2 - mu) / jnp.sqrt(var + LN_EPS) * p["ln_g"] + p["ln_b"]
    h2 = jnp.where(h2 > 0, h2, 0.2 * h2)
    return jax.nn.sigmoid(h2 @ p["w3"] + p["b3"])


if __name__ == "__main__":
    key = jax.random.PRNGKey(0)
    k_x, k_p, k_x2 = jax.random.split(key, 3)

    params = init_params(k_p)

    # Small single-block case (padded to one 128-row, lane-aligned tile).
    B = 8
    x = jax.random.normal(k_x, (B, EMB_DIM), jnp.float32)
    out = discriminator_forward(x, params)
    jax.block_until_ready(out)
    ref = _reference(x, params)
    assert out.shape == (B, 1)
    assert jnp.allclose(out, ref, atol=2e-5, rtol=2e-5), "mismatch vs reference (B=8)"

    # Multi-block case exercising the batch grid and tail padding.
    B2 = 260
    x2 = jax.random.normal(k_x2, (B2, EMB_DIM), jnp.float32)
    out2 = discriminator_forward(x2, params, block_rows=128)
    jax.block_until_ready(out2)
    ref2 = _reference(x2, params)
    assert out2.shape == (B2, 1)
    assert jnp.allclose(out2, ref2, atol=2e-5, rtol=2e-5), "mismatch vs reference (B=260)"

    # Default (large-tile) path: checks the >=2-block split and 128-row padding cap.
    out3 = discriminator_forward(x2, params)
    jax.block_until_ready(out3)
    assert jnp.allclose(out3, ref2, atol=2e-5, rtol=2e-5), "mismatch vs reference (default tiles)"

    print("KERNEL_OK")
</pallas_src>

<mosaic_0001>
module attributes {stable_mosaic.version = 11 : i64} {
  func.func @discriminator_kernel(%arg0: i32, %arg1: memref<128x32xf32, #tpu.memory_space<vmem>>, %arg2: memref<32x128xf32, #tpu.memory_space<vmem>>, %arg3: memref<1x128xf32, #tpu.memory_space<vmem>>, %arg4: memref<128x64xf32, #tpu.memory_space<vmem>>, %arg5: memref<1x64xf32, #tpu.memory_space<vmem>>, %arg6: memref<1x64xf32, #tpu.memory_space<vmem>>, %arg7: memref<1x64xf32, #tpu.memory_space<vmem>>, %arg8: memref<1x64xf32, #tpu.memory_space<vmem>>, %arg9: memref<1xf32, #tpu.memory_space<smem>>, %arg10: memref<1x128xf32, #tpu.memory_space<vmem>>) attributes {dimension_semantics = [#tpu.dimension_semantics<parallel>], iteration_bounds = array<i64: 1>, scalar_prefetch = 0 : i64, scratch_operands = 0 : i64, tpu.core_type = #tpu.core_type<tc>, window_params = [{transform_indices = @transform_0, window_bounds = array<i64: 128, 32>}, {pipeline_mode = #tpu.pipeline_mode<synchronous>, transform_indices = @transform_1, window_bounds = array<i64: 32, 128>}, {pipeline_mode = #tpu.pipeline_mode<synchronous>, transform_indices = @transform_2, window_bounds = array<i64: 1, 128>}, {pipeline_mode = #tpu.pipeline_mode<synchronous>, transform_indices = @transform_3, window_bounds = array<i64: 128, 64>}, {pipeline_mode = #tpu.pipeline_mode<synchronous>, transform_indices = @transform_4, window_bounds = array<i64: 1, 64>}, {pipeline_mode = #tpu.pipeline_mode<synchronous>, transform_indices = @transform_5, window_bounds = array<i64: 1, 64>}, {pipeline_mode = #tpu.pipeline_mode<synchronous>, transform_indices = @transform_6, window_bounds = array<i64: 1, 64>}, {pipeline_mode = #tpu.pipeline_mode<synchronous>, transform_indices = @transform_7, window_bounds = array<i64: 1, 64>}, {transform_indices = @transform_8, window_bounds = array<i64: 1>}, {transform_indices = @transform_9, window_bounds = array<i64: 1, 128>}]} {
    %c0 = arith.constant 0 : index
    %c0_0 = arith.constant 0 : index
    %0 = vector.load %arg1[%c0, %c0_0] : memref<128x32xf32, #tpu.memory_space<vmem>>, vector<128x32xf32>
    %c0_1 = arith.constant 0 : index
    %c0_2 = arith.constant 0 : index
    %1 = vector.load %arg2[%c0_1, %c0_2] : memref<32x128xf32, #tpu.memory_space<vmem>>, vector<32x128xf32>
    %cst = arith.constant dense<0.000000e+00> : vector<128x128xf32>
    %2 = tpu.matmul %0, %1, %cst {dimension_numbers = #tpu.dot_dimension_numbers<[1], [0], [0], [1], [0, 0, 1, 1], [], []>} : vector<128x32xf32>, vector<32x128xf32>, vector<128x128xf32> -> vector<128x128xf32>
    %c0_3 = arith.constant 0 : index
    %c0_4 = arith.constant 0 : index
    %3 = vector.load %arg3[%c0_3, %c0_4] : memref<1x128xf32, #tpu.memory_space<vmem>>, vector<1x128xf32>
    %4 = vector.broadcast %3 : vector<1x128xf32> to vector<128x128xf32>
    %5 = arith.addf %2, %4 : vector<128x128xf32>
    %cst_5 = arith.constant 2.000000e-01 : f32
    %6 = vector.broadcast %cst_5 : f32 to vector<128x128xf32>
    %7 = arith.mulf %6, %5 : vector<128x128xf32>
    %8 = arith.maximumf %5, %7 : vector<128x128xf32>
    %c0_6 = arith.constant 0 : index
    %c0_7 = arith.constant 0 : index
    %9 = vector.load %arg4[%c0_6, %c0_7] : memref<128x64xf32, #tpu.memory_space<vmem>>, vector<128x64xf32>
    %cst_8 = arith.constant dense<0.000000e+00> : vector<128x64xf32>
    %10 = tpu.matmul %8, %9, %cst_8 {dimension_numbers = #tpu.dot_dimension_numbers<[1], [0], [0], [1], [0, 0, 1, 1], [], []>} : vector<128x128xf32>, vector<128x64xf32>, vector<128x64xf32> -> vector<128x64xf32>
    %c0_9 = arith.constant 0 : index
    %c0_10 = arith.constant 0 : index
    %11 = vector.load %arg5[%c0_9, %c0_10] : memref<1x64xf32, #tpu.memory_space<vmem>>, vector<1x64xf32>
    %12 = vector.broadcast %11 : vector<1x64xf32> to vector<128x64xf32>
    %13 = arith.addf %10, %12 : vector<128x64xf32>
    %cst_11 = arith.constant dense<0.000000e+00> : vector<128xf32>
    %14 = vector.multi_reduction <add>, %13, %cst_11 [1] : vector<128x64xf32> to vector<128xf32>
    %15 = vector.shape_cast %14 : vector<128xf32> to vector<128x1xf32>
    %cst_12 = arith.constant 6.400000e+01 : f32
    %16 = vector.broadcast %cst_12 : f32 to vector<128x1xf32>
    %17 = arith.divf %15, %16 : vector<128x1xf32>
    %18 = arith.mulf %13, %13 : vector<128x64xf32>
    %cst_13 = arith.constant dense<0.000000e+00> : vector<128xf32>
    %19 = vector.multi_reduction <add>, %18, %cst_13 [1] : vector<128x64xf32> to vector<128xf32>
    %20 = vector.shape_cast %19 : vector<128xf32> to vector<128x1xf32>
    %cst_14 = arith.constant 6.400000e+01 : f32
    %21 = vector.broadcast %cst_14 : f32 to vector<128x1xf32>
    %22 = arith.divf %20, %21 : vector<128x1xf32>
    %23 = arith.mulf %17, %17 : vector<128x1xf32>
    %24 = arith.subf %22, %23 : vector<128x1xf32>
    %cst_15 = arith.constant 0.000000e+00 : f32
    %25 = vector.broadcast %cst_15 : f32 to vector<128x1xf32>
    %26 = arith.maximumf %24, %25 : vector<128x1xf32>
    %cst_16 = arith.constant 9.99999974E-6 : f32
    %27 = vector.broadcast %cst_16 : f32 to vector<128x1xf32>
    %28 = arith.addf %26, %27 : vector<128x1xf32>
    %29 = math.rsqrt %28 : vector<128x1xf32>
    %30 = vector.broadcast %17 : vector<128x1xf32> to vector<128x64xf32>
    %31 = arith.subf %13, %30 : vector<128x64xf32>
    %c0_17 = arith.constant 0 : index
    %c0_18 = arith.constant 0 : index
    %32 = vector.load %arg6[%c0_17, %c0_18] : memref<1x64xf32, #tpu.memory_space<vmem>>, vector<1x64xf32>
    %33 = vector.broadcast %29 : vector<128x1xf32> to vector<128x64xf32>
    %34 = vector.broadcast %32 : vector<1x64xf32> to vector<128x64xf32>
    %35 = arith.mulf %33, %34 : vector<128x64xf32>
    %36 = arith.mulf %31, %35 : vector<128x64xf32>
    %c0_19 = arith.constant 0 : index
    %c0_20 = arith.constant 0 : index
    %37 = vector.load %arg7[%c0_19, %c0_20] : memref<1x64xf32, #tpu.memory_space<vmem>>, vector<1x64xf32>
    %38 = vector.broadcast %37 : vector<1x64xf32> to vector<128x64xf32>
    %39 = arith.addf %36, %38 : vector<128x64xf32>
    %cst_21 = arith.constant 2.000000e-01 : f32
    %40 = vector.broadcast %cst_21 : f32 to vector<128x64xf32>
    %41 = arith.mulf %40, %39 : vector<128x64xf32>
    %42 = arith.maximumf %39, %41 : vector<128x64xf32>
    %c0_22 = arith.constant 0 : index
    %c0_23 = arith.constant 0 : index
    %43 = vector.load %arg8[%c0_22, %c0_23] : memref<1x64xf32, #tpu.memory_space<vmem>>, vector<1x64xf32>
    %cst_24 = arith.constant dense<0.000000e+00> : vector<1x128xf32>
    %44 = tpu.matmul %43, %42, %cst_24 {dimension_numbers = #tpu.dot_dimension_numbers<[1], [1], [0], [0], [0, 0, 1, 0], [], []>} : vector<1x64xf32>, vector<128x64xf32>, vector<1x128xf32> -> vector<1x128xf32>
    %c0_25 = arith.constant 0 : index
    %45 = memref.load %arg9[%c0_25] : memref<1xf32, #tpu.memory_space<smem>>
    %46 = vector.broadcast %45 : f32 to vector<1x128xf32>
    %47 = arith.addf %44, %46 : vector<1x128xf32>
    %48 = arith.negf %47 : vector<1x128xf32>
    %49 = math.exp %48 : vector<1x128xf32>
    %cst_26 = arith.constant 1.000000e+00 : f32
    %50 = vector.broadcast %cst_26 : f32 to vector<1x128xf32>
    %51 = arith.addf %50, %49 : vector<1x128xf32>
    %52 = arith.divf %50, %51 : vector<1x128xf32>
    %c0_27 = arith.constant 0 : index
    %c0_28 = arith.constant 0 : index
    %53 = vector.load %arg10[%c0_27, %c0_28] : memref<1x128xf32, #tpu.memory_space<vmem>>, vector<1x128xf32>
    tpu.vector_store %arg10[%c0_27, %c0_28], %52 {strides = array<i32>} : memref<1x128xf32, #tpu.memory_space<vmem>>, vector<1x128xf32>,
    return
  }
  func.func @transform_0(%arg0: i32) -> (i32, i32) {
    %c0_i32 = arith.constant 0 : i32
    %c0_i32_0 = arith.constant 0 : i32
    return %arg0, %c0_i32 : i32, i32
  }
  func.func @transform_1(%arg0: i32) -> (i32, i32) {
    %c0_i32 = arith.constant 0 : i32
    %c0_i32_0 = arith.constant 0 : i32
    %c0_i32_1 = arith.constant 0 : i32
    return %c0_i32, %c0_i32_0 : i32, i32
  }
  func.func @transform_2(%arg0: i32) -> (i32, i32) {
    %c0_i32 = arith.constant 0 : i32
    %c0_i32_0 = arith.constant 0 : i32
    %c0_i32_1 = arith.constant 0 : i32
    return %c0_i32, %c0_i32_0 : i32, i32
  }
  func.func @transform_3(%arg0: i32) -> (i32, i32) {
    %c0_i32 = arith.constant 0 : i32
    %c0_i32_0 = arith.constant 0 : i32
    %c0_i32_1 = arith.constant 0 : i32
    return %c0_i32, %c0_i32_0 : i32, i32
  }
  func.func @transform_4(%arg0: i32) -> (i32, i32) {
    %c0_i32 = arith.constant 0 : i32
    %c0_i32_0 = arith.constant 0 : i32
    %c0_i32_1 = arith.constant 0 : i32
    return %c0_i32, %c0_i32_0 : i32, i32
  }
  func.func @transform_5(%arg0: i32) -> (i32, i32) {
    %c0_i32 = arith.constant 0 : i32
    %c0_i32_0 = arith.constant 0 : i32
    %c0_i32_1 = arith.constant 0 : i32
    return %c0_i32, %c0_i32_0 : i32, i32
  }
  func.func @transform_6(%arg0: i32) -> (i32, i32) {
    %c0_i32 = arith.constant 0 : i32
    %c0_i32_0 = arith.constant 0 : i32
    %c0_i32_1 = arith.constant 0 : i32
    return %c0_i32, %c0_i32_0 : i32, i32
  }
  func.func @transform_7(%arg0: i32) -> (i32, i32) {
    %c0_i32 = arith.constant 0 : i32
    %c0_i32_0 = arith.constant 0 : i32
    %c0_i32_1 = arith.constant 0 : i32
    return %c0_i32, %c0_i32_0 : i32, i32
  }
  func.func @transform_8(%arg0: i32) -> i32 {
    %c0_i32 = arith.constant 0 : i32
    %c0_i32_0 = arith.constant 0 : i32
    return %c0_i32 : i32
  }
  func.func @transform_9(%arg0: i32) -> (i32, i32) {
    %c0_i32 = arith.constant 0 : i32
    %c0_i32_0 = arith.constant 0 : i32
    return %c0_i32, %arg0 : i32, i32
  }
}

</mosaic_0001>

<llo_original>
// kernel: tpu_custom_call.1
$region0: #{tpu_custom_call.1}
  #allocation0 [shape = 'u32[]', space=smem, size = 0x4, offset = 0x4, fixed_abs, tag = 'smem constant byte address 0x4 - core index']
  #allocation1 [shape = 'u32[144,128]{1,0:T(1,128)}', space=vmem, size = 0x12000, scoped, tag = 'internal scratch']
  #allocation2 [shape = 'f32[1]{0:T(128)S(6)}', space=smem, size = 0x200, scoped, tag = 'scoped memory for tpu_custom_call.1']
  %s0 = inlined_call_operand.vmem [shape: f32[128,32], index: 0, kind: input, shape index: {}]
  %s1 = inlined_call_operand.vmem [shape: f32[32,128], index: 1, kind: input, shape index: {}]
  %s2 = inlined_call_operand.vmem [shape: f32[1,128], index: 2, kind: input, shape index: {}]
  %s3 = inlined_call_operand.vmem [shape: f32[128,64], index: 3, kind: input, shape index: {}]
  %s4 = inlined_call_operand.vmem [shape: f32[1,64], index: 4, kind: input, shape index: {}]
  %s5 = inlined_call_operand.vmem [shape: f32[1,64], index: 5, kind: input, shape index: {}]
  %s6 = inlined_call_operand.vmem [shape: f32[1,64], index: 6, kind: input, shape index: {}]
  %s7 = inlined_call_operand.vmem [shape: f32[1,64], index: 7, kind: input, shape index: {}]
  %s8 = inlined_call_operand.<no memory space> [shape: f32[1], index: 8, kind: input, shape index: {}]
  %s9 = inlined_call_operand.hbm [shape: f32[1,128], index: 9, kind: output, shape index: {}]
  %s10 = sld [smem:[#allocation0]]
  $region46: #{tpu_custom_call.1} parent=0
    _
  %s12 = ssub.s32 1, %s10
  %s13 = scalar_select 0, %s12, %s10
  %14 = sst [smem:[#allocation2]] %s8
  $region1: #{tpu_custom_call.1} parent=0
    #allocation3 [shape = 'u8[512]{0}', space=vmem, size = 0x400, scoped, tag = 'output window, operand 0, single buffered']
    #allocation4 [shape = 's32[1]{0}', space=sflag, size = 0x4, scoped, tag = 'scoped memory for tpu_custom_call.1']
    %15 = vsyncpa [#allocation4], 0
    // Predicated region
    $region2: #{tpu_custom_call.1} parent=1 // pred_check
      _
    $region3: #{tpu_custom_call.1} parent=1 // pred_check_branch
      %17 = sbr.rel (0) target = $region5
    $region4: #{tpu_custom_call.1} parent=1 // pred_region
      _
    $region5: #{tpu_custom_call.1} parent=1 // pred_fallthru
      _
    // Predicated region
    $region6: #{tpu_custom_call.1} parent=1 // pred_check
      _
    $region7: #{tpu_custom_call.1} parent=1 // pred_check_branch
      %19 = sbr.rel (0) target = $region9
    $region8: #{tpu_custom_call.1} parent=1 // pred_region
      _
    $region9: #{tpu_custom_call.1} parent=1 // pred_fallthru
      _
    // Predicated region
    $region10: #{tpu_custom_call.1} parent=1 // pred_check
      _
    $region11: #{tpu_custom_call.1} parent=1 // pred_check_branch
      %21 = sbr.rel (0) target = $region13
    $region12: #{tpu_custom_call.1} parent=1 // pred_region
      _
    $region13: #{tpu_custom_call.1} parent=1 // pred_fallthru
      _
    // Predicated region
    $region14: #{tpu_custom_call.1} parent=1 // pred_check
      _
    $region15: #{tpu_custom_call.1} parent=1 // pred_check_branch
      %23 = sbr.rel (0) target = $region17
    $region16: #{tpu_custom_call.1} parent=1 // pred_region
      _
    $region17: #{tpu_custom_call.1} parent=1 // pred_fallthru
      _
    // Predicated region
    $region18: #{tpu_custom_call.1} parent=1 // pred_check
      _
    $region19: #{tpu_custom_call.1} parent=1 // pred_check_branch
      %25 = sbr.rel (0) target = $region21
    $region20: #{tpu_custom_call.1} parent=1 // pred_region
      _
    $region21: #{tpu_custom_call.1} parent=1 // pred_fallthru
      _
    // Predicated region
    $region22: #{tpu_custom_call.1} parent=1 // pred_check
      _
    $region23: #{tpu_custom_call.1} parent=1 // pred_check_branch
      %27 = sbr.rel (0) target = $region25
    $region24: #{tpu_custom_call.1} parent=1 // pred_region
      _
    $region25: #{tpu_custom_call.1} parent=1 // pred_fallthru
      _
    // Predicated region
    $region26: #{tpu_custom_call.1} parent=1 // pred_check
      _
    $region27: #{tpu_custom_call.1} parent=1 // pred_check_branch
      %29 = sbr.rel (0) target = $region29
    $region28: #{tpu_custom_call.1} parent=1 // pred_region
      _
    $region29: #{tpu_custom_call.1} parent=1 // pred_fallthru
      _
    // Predicated region
    $region30: #{tpu_custom_call.1} parent=1 // pred_check
      _
    $region31: #{tpu_custom_call.1} parent=1 // pred_check_branch
      %31 = sbr.rel (0) target = $region33
    $region32: #{tpu_custom_call.1} parent=1 // pred_region
      _
    $region33: #{tpu_custom_call.1} parent=1 // pred_fallthru
      _
    // Predicated region
    $region34: #{tpu_custom_call.1} parent=1 // pred_check
      _
    $region35: #{tpu_custom_call.1} parent=1 // pred_check_branch
      %33 = sbr.rel (0) target = $region37
    $region36: #{tpu_custom_call.1} parent=1 // pred_region
      _
    $region37: #{tpu_custom_call.1} parent=1 // pred_fallthru
      _
    %v34 = vld [vmem:[%s0] sm:$0xff]
    %v35 = vld [vmem:[%s0 + $0x8] sm:$0xff]
    %v36 = vld [vmem:[%s0 + $0x10] sm:$0xff]
    %v37 = vld [vmem:[%s0 + $0x18] sm:$0xff]
    %v38 = vld [vmem:[%s0 + $0x20] sm:$0xff]
    %v39 = vld [vmem:[%s0 + $0x28] sm:$0xff]
    %v40 = vld [vmem:[%s0 + $0x30] sm:$0xff]
    %v41 = vld [vmem:[%s0 + $0x38] sm:$0xff]
    %v42 = vld [vmem:[%s0 + $0x40] sm:$0xff]
    %v43 = vld [vmem:[%s0 + $0x48] sm:$0xff]
    %v44 = vld [vmem:[%s0 + $0x50] sm:$0xff]
    %v45 = vld [vmem:[%s0 + $0x58] sm:$0xff]
    %v46 = vld [vmem:[%s0 + $0x60] sm:$0xff]
    %v47 = vld [vmem:[%s0 + $0x68] sm:$0xff]
    %v48 = vld [vmem:[%s0 + $0x70] sm:$0xff]
    %v49 = vld [vmem:[%s0 + $0x78] sm:$0xff]
    %v50 = vld [vmem:[%s1] sm:$0xff]
    %v51 = vld [vmem:[%s1 + $0x8] sm:$0xff]
    %v52 = vld [vmem:[%s1 + $0x10] sm:$0xff]
    %v53 = vld [vmem:[%s1 + $0x18] sm:$0xff]
    %v54 = vld [vmem:[%s2] sm:$0x1]
    %v56 = vlaneseq
    %v57 = vshrl.u32 %v56, 7
    %v58 = vsub.s32 0, %v57
    %v59 = vrot.slane %v54, %v58
    %vm61 = vcmask 261120
    %v63 = vsel %vm61, %v34, 0
    %v66 = vsel %vm61, %v35, 0
    %v69 = vsel %vm61, %v36, 0
    %v72 = vsel %vm61, %v37, 0
    %v75 = vsel %vm61, %v38, 0
    %v78 = vsel %vm61, %v39, 0
    %v81 = vsel %vm61, %v40, 0
    %v84 = vsel %vm61, %v41, 0
    %v87 = vsel %vm61, %v42, 0
    %v90 = vsel %vm61, %v43, 0
    %v93 = vsel %vm61, %v44, 0
    %v96 = vsel %vm61, %v45, 0
    %v99 = vsel %vm61, %v46, 0
    %v102 = vsel %vm61, %v47, 0
    %v105 = vsel %vm61, %v48, 0
    %v108 = vsel %vm61, %v49, 0
    %110 = vmatprep.subr.mxu0 0.0
    %111 = vmatpush1.msra.mxu0 %v50
    %112 = vmatprep.subr.mxu0 0.0
    %113 = vmatpush1.msra.mxu0 %v51
    %114 = vmatprep.subr.mxu0 0.0
    %115 = vmatpush1.msra.mxu0 %v52
    %116 = vmatprep.subr.mxu0 0.0
    %117 = vmatpush1.msra.mxu0 %v53
    %118 = vmatprep.subr.mxu0 0.0
    %119 = vmatpush1.msra.mxu0 0.0
    %120 = vmatprep.subr.mxu0 0.0
    %121 = vmatpush1.msra.mxu0 0.0
    %122 = vmatprep.subr.mxu0 0.0
    %123 = vmatpush1.msra.mxu0 0.0
    %124 = vmatprep.subr.mxu0 0.0
    %125 = vmatpush1.msra.mxu0 0.0
    %126 = vmatprep.subr.mxu0 0.0
    %127 = vmatpush1.msra.mxu0 0.0
    %128 = vmatprep.subr.mxu0 0.0
    %129 = vmatpush1.msra.mxu0 0.0
    %130 = vmatprep.subr.mxu0 0.0
    %131 = vmatpush1.msra.mxu0 0.0
    %132 = vmatprep.subr.mxu0 0.0
    %133 = vmatpush1.msra.mxu0 0.0
    %134 = vmatprep.subr.mxu0 0.0
    %135 = vmatpush1.msra.mxu0 0.0
    %136 = vmatprep.subr.mxu0 0.0
    %137 = vmatpush1.msra.mxu0 0.0
    %138 = vmatprep.subr.mxu0 0.0
    %139 = vmatpush1.msra.mxu0 0.0
    %140 = vmatprep.subr.mxu0 0.0
    %141 = vmatpush1.msra.mxu0 0.0
    %142 = vmatprep.subr.mxu0 0.0
    %143 = vmatpush1.msra.mxu0 0.0
    %144 = vmatprep.subr.mxu0 0.0
    %145 = vmatpush1.msra.mxu0 0.0
    %146 = vmatprep.subr.mxu0 0.0
    %147 = vmatpush1.msra.mxu0 0.0
    %148 = vmatprep.subr.mxu0 0.0
    %149 = vmatpush1.msra.mxu0 0.0
    %150 = vmatprep.subr.mxu0 0.0
    %151 = vmatpush1.msra.mxu0 0.0
    %152 = vmatprep.subr.mxu0 0.0
    %153 = vmatpush1.msra.mxu0 0.0
    %154 = vmatprep.subr.mxu0 0.0
    %155 = vmatpush1.msra.mxu0 0.0
    %156 = vmatprep.subr.mxu0 0.0
    %157 = vmatpush1.msra.mxu0 0.0
    %158 = vmatprep.subr.mxu0 0.0
    %159 = vmatpush1.msra.mxu0 0.0
    %160 = vmatprep.subr.mxu0 0.0
    %161 = vmatpush1.msra.mxu0 0.0
    %162 = vmatprep.subr.mxu0 0.0
    %163 = vmatpush1.msra.mxu0 0.0
    %164 = vmatprep.subr.mxu0 0.0
    %165 = vmatpush1.msra.mxu0 0.0
    %166 = vmatprep.subr.mxu0 0.0
    %167 = vmatpush1.msra.mxu0 0.0
    %168 = vmatprep.subr.mxu0 0.0
    %169 = vmatpush1.msra.mxu0 0.0
    %170 = vmatprep.subr.mxu0 0.0
    %171 = vmatpush1.msra.mxu0 0.0
    %172 = vmatprep.subr.mxu0 0.0
    %173 = vmatpush1.msra.mxu0 0.0
    %174 = vmatprep.mubr.f32.mxu0 0.0
    %175 = vmatmul.mubr.f32.gmra.mrb[0].mxu0 %v63
    %v176 = vpop.f32.mrb[0].mxu0
    %v177 = vadd.f32 %v59, %v176
    %v178 = vpop.f32.mrb[0].mxu0
    %179 = vmatprep.mubr.f32.mxu0 0.0
    %180 = vmatmul.mubr.f32.gmra.mrb[0].mxu0 %v66
    %v181 = vpop.f32.mrb[0].mxu0
    %v182 = vadd.f32 %v59, %v181
    %v183 = vpop.f32.mrb[0].mxu0
    %184 = vmatprep.mubr.f32.mxu0 0.0
    %185 = vmatmul.mubr.f32.gmra.mrb[0].mxu0 %v69
    %v186 = vpop.f32.mrb[0].mxu0
    %v187 = vadd.f32 %v59, %v186
    %v188 = vpop.f32.mrb[0].mxu0
    %189 = vmatprep.mubr.f32.mxu0 0.0
    %190 = vmatmul.mubr.f32.gmra.mrb[0].mxu0 %v72
    %v191 = vpop.f32.mrb[0].mxu0
    %v192 = vadd.f32 %v59, %v191
    %v193 = vpop.f32.mrb[0].mxu0
    %194 = vmatprep.mubr.f32.mxu0 0.0
    %195 = vmatmul.mubr.f32.gmra.mrb[0].mxu0 %v75
    %v196 = vpop.f32.mrb[0].mxu0
    %v197 = vadd.f32 %v59, %v196
    %v198 = vpop.f32.mrb[0].mxu0
    %199 = vmatprep.mubr.f32.mxu0 0.0
    %200 = vmatmul.mubr.f32.gmra.mrb[0].mxu0 %v78
    %v201 = vpop.f32.mrb[0].mxu0
    %v202 = vadd.f32 %v59, %v201
    %v203 = vpop.f32.mrb[0].mxu0
    %204 = vmatprep.mubr.f32.mxu0 0.0
    %205 = vmatmul.mubr.f32.gmra.mrb[0].mxu0 %v81
    %v206 = vpop.f32.mrb[0].mxu0
    %v207 = vadd.f32 %v59, %v206
    %v208 = vpop.f32.mrb[0].mxu0
    %209 = vmatprep.mubr.f32.mxu0 0.0
    %210 = vmatmul.mubr.f32.gmra.mrb[0].mxu0 %v84
    %v211 = vpop.f32.mrb[0].mxu0
    %v212 = vadd.f32 %v59, %v211
    %v213 = vpop.f32.mrb[0].mxu0
    %214 = vmatprep.mubr.f32.mxu0 0.0
    %215 = vmatmul.mubr.f32.gmra.mrb[0].mxu0 %v87
    %v216 = vpop.f32.mrb[0].mxu0
    %v217 = vadd.f32 %v59, %v216
    %v218 = vpop.f32.mrb[0].mxu0
    %219 = vmatprep.mubr.f32.mxu0 0.0
    %220 = vmatmul.mubr.f32.gmra.mrb[0].mxu0 %v90
    %v221 = vpop.f32.mrb[0].mxu0
    %v222 = vadd.f32 %v59, %v221
    %v223 = vpop.f32.mrb[0].mxu0
    %224 = vmatprep.mubr.f32.mxu0 0.0
    %225 = vmatmul.mubr.f32.gmra.mrb[0].mxu0 %v93
    %v226 = vpop.f32.mrb[0].mxu0
    %v227 = vadd.f32 %v59, %v226
    %v228 = vpop.f32.mrb[0].mxu0
    %229 = vmatprep.mubr.f32.mxu0 0.0
    %230 = vmatmul.mubr.f32.gmra.mrb[0].mxu0 %v96
    %v231 = vpop.f32.mrb[0].mxu0
    %v232 = vadd.f32 %v59, %v231
    %v233 = vpop.f32.mrb[0].mxu0
    %234 = vmatprep.mubr.f32.mxu0 0.0
    %235 = vmatmul.mubr.f32.gmra.mrb[0].mxu0 %v99
    %v236 = vpop.f32.mrb[0].mxu0
    %v237 = vadd.f32 %v59, %v236
    %v238 = vpop.f32.mrb[0].mxu0
    %239 = vmatprep.mubr.f32.mxu0 0.0
    %240 = vmatmul.mubr.f32.gmra.mrb[0].mxu0 %v102
    %v241 = vpop.f32.mrb[0].mxu0
    %v242 = vadd.f32 %v59, %v241
    %v243 = vpop.f32.mrb[0].mxu0
    %244 = vmatprep.mubr.f32.mxu0 0.0
    %245 = vmatmul.mubr.f32.gmra.mrb[0].mxu0 %v105
    %v246 = vpop.f32.mrb[0].mxu0
    %v247 = vadd.f32 %v59, %v246
    %v248 = vpop.f32.mrb[0].mxu0
    %249 = vmatprep.mubr.f32.mxu0 0.0
    %250 = vmatmul.mubr.f32.gmra.mrb[0].mxu0 %v108
    %v251 = vpop.f32.mrb[0].mxu0
    %v252 = vadd.f32 %v59, %v251
    %v253 = vpop.f32.mrb[0].mxu0
    %254 = vdwg.mxu0
    %v255 = vmul.f32 %v177, 0.2
    %v256 = vmul.f32 %v182, 0.2
    %v257 = vmul.f32 %v187, 0.2
    %v258 = vmul.f32 %v192, 0.2
    %v259 = vmul.f32 %v197, 0.2
    %v260 = vmul.f32 %v202, 0.2
    %v261 = vmul.f32 %v207, 0.2
    %v262 = vmul.f32 %v212, 0.2
    %v263 = vmul.f32 %v217, 0.2
    %v264 = vmul.f32 %v222, 0.2
    %v265 = vmul.f32 %v227, 0.2
    %v266 = vmul.f32 %v232, 0.2
    %v267 = vmul.f32 %v237, 0.2
    %v268 = vmul.f32 %v242, 0.2
    %v269 = vmul.f32 %v247, 0.2
    %v270 = vmul.f32 %v252, 0.2
    %v271 = vmax.f32 %v177, %v255
    %v272 = vmax.f32 %v182, %v256
    %v273 = vmax.f32 %v187, %v257
    %v274 = vmax.f32 %v192, %v258
    %v275 = vmax.f32 %v197, %v259
    %v276 = vmax.f32 %v202, %v260
    %v277 = vmax.f32 %v207, %v261
    %v278 = vmax.f32 %v212, %v262
    %v279 = vmax.f32 %v217, %v263
    %v280 = vmax.f32 %v222, %v264
    %v281 = vmax.f32 %v227, %v265
    %v282 = vmax.f32 %v232, %v266
    %v283 = vmax.f32 %v237, %v267
    %v284 = vmax.f32 %v242, %v268
    %v285 = vmax.f32 %v247, %v269
    %v286 = vmax.f32 %v252, %v270
    %v287 = vld [vmem:[%s3] sm:$0xff]
    %v288 = vld [vmem:[%s3 + $0x8] sm:$0xff]
    %v289 = vld [vmem:[%s3 + $0x10] sm:$0xff]
    %v290 = vld [vmem:[%s3 + $0x18] sm:$0xff]
    %v291 = vld [vmem:[%s3 + $0x20] sm:$0xff]
    %v292 = vld [vmem:[%s3 + $0x28] sm:$0xff]
    %v293 = vld [vmem:[%s3 + $0x30] sm:$0xff]
    %v294 = vld [vmem:[%s3 + $0x38] sm:$0xff]
    %v295 = vld [vmem:[%s3 + $0x40] sm:$0xff]
    %v296 = vld [vmem:[%s3 + $0x48] sm:$0xff]
    %v297 = vld [vmem:[%s3 + $0x50] sm:$0xff]
    %v298 = vld [vmem:[%s3 + $0x58] sm:$0xff]
    %v299 = vld [vmem:[%s3 + $0x60] sm:$0xff]
    %v300 = vld [vmem:[%s3 + $0x68] sm:$0xff]
    %v301 = vld [vmem:[%s3 + $0x70] sm:$0xff]
    %v302 = vld [vmem:[%s3 + $0x78] sm:$0xff]
    %v303 = vld [vmem:[%s4] sm:$0x1]
    %v305 = vlaneseq
    %v306 = vshrl.u32 %v305, 7
    %v307 = vsub.s32 0, %v306
    %v308 = vrot.slane %v303, %v307
    %310 = vmatprep.subr.mxu0 0.0
    %311 = vmatpush1.msra.mxu0 %v287
    %312 = vmatprep.subr.mxu0 0.0
    %313 = vmatpush1.msra.mxu0 %v288
    %314 = vmatprep.subr.mxu0 0.0
    %315 = vmatpush1.msra.mxu0 %v289
    %316 = vmatprep.subr.mxu0 0.0
    %317 = vmatpush1.msra.mxu0 %v290
    %318 = vmatprep.subr.mxu0 0.0
    %319 = vmatpush1.msra.mxu0 %v291
    %320 = vmatprep.subr.mxu0 0.0
    %321 = vmatpush1.msra.mxu0 %v292
    %322 = vmatprep.subr.mxu0 0.0
    %323 = vmatpush1.msra.mxu0 %v293
    %324 = vmatprep.subr.mxu0 0.0
    %325 = vmatpush1.msra.mxu0 %v294
    %326 = vmatprep.subr.mxu0 0.0
    %327 = vmatpush1.msra.mxu0 %v295
    %328 = vmatprep.subr.mxu0 0.0
    %329 = vmatpush1.msra.mxu0 %v296
    %330 = vmatprep.subr.mxu0 0.0
    %331 = vmatpush1.msra.mxu0 %v297
    %332 = vmatprep.subr.mxu0 0.0
    %333 = vmatpush1.msra.mxu0 %v298
    %334 = vmatprep.subr.mxu0 0.0
    %335 = vmatpush1.msra.mxu0 %v299
    %336 = vmatprep.subr.mxu0 0.0
    %337 = vmatpush1.msra.mxu0 %v300
    %338 = vmatprep.subr.mxu0 0.0
    %339 = vmatpush1.msra.mxu0 %v301
    %340 = vmatprep.subr.mxu0 0.0
    %341 = vmatpush1.msra.mxu0 %v302
    %342 = vmatprep.subr.mxu0 0.0
    %343 = vmatpush1.msra.mxu0 0.0
    %344 = vmatprep.subr.mxu0 0.0
    %345 = vmatpush1.msra.mxu0 0.0
    %346 = vmatprep.subr.mxu0 0.0
    %347 = vmatpush1.msra.mxu0 0.0
    %348 = vmatprep.subr.mxu0 0.0
    %349 = vmatpush1.msra.mxu0 0.0
    %350 = vmatprep.subr.mxu0 0.0
    %351 = vmatpush1.msra.mxu0 0.0
    %352 = vmatprep.subr.mxu0 0.0
    %353 = vmatpush1.msra.mxu0 0.0
    %354 = vmatprep.subr.mxu0 0.0
    %355 = vmatpush1.msra.mxu0 0.0
    %356 = vmatprep.subr.mxu0 0.0
    %357 = vmatpush1.msra.mxu0 0.0
    %358 = vmatprep.subr.mxu0 0.0
    %359 = vmatpush1.msra.mxu0 0.0
    %360 = vmatprep.subr.mxu0 0.0
    %361 = vmatpush1.msra.mxu0 0.0
    %362 = vmatprep.subr.mxu0 0.0
    %363 = vmatpush1.msra.mxu0 0.0
    %364 = vmatprep.subr.mxu0 0.0
    %365 = vmatpush1.msra.mxu0 0.0
    %366 = vmatprep.subr.mxu0 0.0
    %367 = vmatpush1.msra.mxu0 0.0
    %368 = vmatprep.subr.mxu0 0.0
    %369 = vmatpush1.msra.mxu0 0.0
    %370 = vmatprep.subr.mxu0 0.0
    %371 = vmatpush1.msra.mxu0 0.0
    %372 = vmatprep.subr.mxu0 0.0
    %373 = vmatpush1.msra.mxu0 0.0
    %374 = vmatprep.mubr.f32.mxu0 0.0
    %375 = vmatmul.mubr.f32.gmra.mrb[0].mxu0 %v271
    %v376 = vpop.f32.mrb[0].mxu0
    %v377 = vadd.f32 %v308, %v376
    %v378 = vpop.f32.mrb[0].mxu0
    %379 = vmatprep.mubr.f32.mxu0 0.0
    %380 = vmatmul.mubr.f32.gmra.mrb[0].mxu0 %v272
    %v381 = vpop.f32.mrb[0].mxu0
    %v382 = vadd.f32 %v308, %v381
    %v383 = vpop.f32.mrb[0].mxu0
    %384 = vmatprep.mubr.f32.mxu0 0.0
    %385 = vmatmul.mubr.f32.gmra.mrb[0].mxu0 %v273
    %v386 = vpop.f32.mrb[0].mxu0
    %v387 = vadd.f32 %v308, %v386
    %v388 = vpop.f32.mrb[0].mxu0
    %389 = vmatprep.mubr.f32.mxu0 0.0
    %390 = vmatmul.mubr.f32.gmra.mrb[0].mxu0 %v274
    %v391 = vpop.f32.mrb[0].mxu0
    %v392 = vadd.f32 %v308, %v391
    %v393 = vpop.f32.mrb[0].mxu0
    %394 = vmatprep.mubr.f32.mxu0 0.0
    %395 = vmatmul.mubr.f32.gmra.mrb[0].mxu0 %v275
    %v396 = vpop.f32.mrb[0].mxu0
    %v397 = vadd.f32 %v308, %v396
    %v398 = vpop.f32.mrb[0].mxu0
    %399 = vmatprep.mubr.f32.mxu0 0.0
    %400 = vmatmul.mubr.f32.gmra.mrb[0].mxu0 %v276
    %v401 = vpop.f32.mrb[0].mxu0
    %v402 = vadd.f32 %v308, %v401
    %v403 = vpop.f32.mrb[0].mxu0
    %404 = vmatprep.mubr.f32.mxu0 0.0
    %405 = vmatmul.mubr.f32.gmra.mrb[0].mxu0 %v277
    %v406 = vpop.f32.mrb[0].mxu0
    %v407 = vadd.f32 %v308, %v406
    %v408 = vpop.f32.mrb[0].mxu0
    %409 = vmatprep.mubr.f32.mxu0 0.0
    %410 = vmatmul.mubr.f32.gmra.mrb[0].mxu0 %v278
    %v411 = vpop.f32.mrb[0].mxu0
    %v412 = vadd.f32 %v308, %v411
    %v413 = vpop.f32.mrb[0].mxu0
    %414 = vmatprep.mubr.f32.mxu0 0.0
    %415 = vmatmul.mubr.f32.gmra.mrb[0].mxu0 %v279
    %v416 = vpop.f32.mrb[0].mxu0
    %v417 = vadd.f32 %v308, %v416
    %v418 = vpop.f32.mrb[0].mxu0
    %419 = vmatprep.mubr.f32.mxu0 0.0
    %420 = vmatmul.mubr.f32.gmra.mrb[0].mxu0 %v280
    %v421 = vpop.f32.mrb[0].mxu0
    %v422 = vadd.f32 %v308, %v421
    %v423 = vpop.f32.mrb[0].mxu0
    %424 = vmatprep.mubr.f32.mxu0 0.0
    %425 = vmatmul.mubr.f32.gmra.mrb[0].mxu0 %v281
    %v426 = vpop.f32.mrb[0].mxu0
    %v427 = vadd.f32 %v308, %v426
    %v428 = vpop.f32.mrb[0].mxu0
    %429 = vmatprep.mubr.f32.mxu0 0.0
    %430 = vmatmul.mubr.f32.gmra.mrb[0].mxu0 %v282
    %v431 = vpop.f32.mrb[0].mxu0
    %v432 = vadd.f32 %v308, %v431
    %v433 = vpop.f32.mrb[0].mxu0
    %434 = vmatprep.mubr.f32.mxu0 0.0
    %435 = vmatmul.mubr.f32.gmra.mrb[0].mxu0 %v283
    %v436 = vpop.f32.mrb[0].mxu0
    %v437 = vadd.f32 %v308, %v436
    %v438 = vpop.f32.mrb[0].mxu0
    %439 = vmatprep.mubr.f32.mxu0 0.0
    %440 = vmatmul.mubr.f32.gmra.mrb[0].mxu0 %v284
    %v441 = vpop.f32.mrb[0].mxu0
    %v442 = vadd.f32 %v308, %v441
    %v443 = vpop.f32.mrb[0].mxu0
    %444 = vmatprep.mubr.f32.mxu0 0.0
    %445 = vmatmul.mubr.f32.gmra.mrb[0].mxu0 %v285
    %v446 = vpop.f32.mrb[0].mxu0
    %v447 = vadd.f32 %v308, %v446
    %v448 = vpop.f32.mrb[0].mxu0
    %449 = vmatprep.mubr.f32.mxu0 0.0
    %450 = vmatmul.mubr.f32.gmra.mrb[0].mxu0 %v286
    %v451 = vpop.f32.mrb[0].mxu0
    %v452 = vadd.f32 %v308, %v451
    %v453 = vpop.f32.mrb[0].mxu0
    %454 = vdwg.mxu0
    %vm455 = vcmask 523264
    %v456 = vsel %vm455, %v377, 0.0
    %457 = vadd.xlane.f32.xlu0 %v456
    %v458 = vpop.xlane.xlu0 %457
    %v459 = vsel %vm455, %v382, 0.0
    %460 = vadd.xlane.f32.xlu0 %v459
    %v461 = vpop.xlane.xlu0 %460
    %v462 = vsel %vm455, %v387, 0.0
    %463 = vadd.xlane.f32.xlu0 %v462
    %v464 = vpop.xlane.xlu0 %463
    %v465 = vsel %vm455, %v392, 0.0
    %466 = vadd.xlane.f32.xlu0 %v465
    %v467 = vpop.xlane.xlu0 %466
    %v468 = vsel %vm455, %v397, 0.0
    %469 = vadd.xlane.f32.xlu0 %v468
    %v470 = vpop.xlane.xlu0 %469
    %v471 = vsel %vm455, %v402, 0.0
    %472 = vadd.xlane.f32.xlu0 %v471
    %v473 = vpop.xlane.xlu0 %472
    %v474 = vsel %vm455, %v407, 0.0
    %475 = vadd.xlane.f32.xlu0 %v474
    %v476 = vpop.xlane.xlu0 %475
    %v477 = vsel %vm455, %v412, 0.0
    %478 = vadd.xlane.f32.xlu0 %v477
    %v479 = vpop.xlane.xlu0 %478
    %v480 = vsel %vm455, %v417, 0.0
    %481 = vadd.xlane.f32.xlu0 %v480
    %v482 = vpop.xlane.xlu0 %481
    %v483 = vsel %vm455, %v422, 0.0
    %484 = vadd.xlane.f32.xlu0 %v483
    %v485 = vpop.xlane.xlu0 %484
    %v486 = vsel %vm455, %v427, 0.0
    %487 = vadd.xlane.f32.xlu0 %v486
    %v488 = vpop.xlane.xlu0 %487
    %v489 = vsel %vm455, %v432, 0.0
    %490 = vadd.xlane.f32.xlu0 %v489
    %v491 = vpop.xlane.xlu0 %490
    %v492 = vsel %vm455, %v437, 0.0
    %493 = vadd.xlane.f32.xlu0 %v492
    %v494 = vpop.xlane.xlu0 %493
    %v495 = vsel %vm455, %v442, 0.0
    %496 = vadd.xlane.f32.xlu0 %v495
    %v497 = vpop.xlane.xlu0 %496
    %v498 = vsel %vm455, %v447, 0.0
    %499 = vadd.xlane.f32.xlu0 %v498
    %v500 = vpop.xlane.xlu0 %499
    %v501 = vsel %vm455, %v452, 0.0
    %502 = vadd.xlane.f32.xlu0 %v501
    %v503 = vpop.xlane.xlu0 %502
    %v504 = vrcp.pop 64.0
    %v505 = vmul.f32 %v458, %v504
    %v506 = vmul.f32 %v461, %v504
    %v507 = vmul.f32 %v464, %v504
    %v508 = vmul.f32 %v467, %v504
    %v509 = vmul.f32 %v470, %v504
    %v510 = vmul.f32 %v473, %v504
    %v511 = vmul.f32 %v476, %v504
    %v512 = vmul.f32 %v479, %v504
    %v513 = vmul.f32 %v482, %v504
    %v514 = vmul.f32 %v485, %v504
    %v515 = vmul.f32 %v488, %v504
    %v516 = vmul.f32 %v491, %v504
    %v517 = vmul.f32 %v494, %v504
    %v518 = vmul.f32 %v497, %v504
    %v519 = vmul.f32 %v500, %v504
    %v520 = vmul.f32 %v503, %v504
    %v521 = vmul.f32 %v377, %v377
    %v522 = vmul.f32 %v382, %v382
    %v523 = vmul.f32 %v387, %v387
    %v524 = vmul.f32 %v392, %v392
    %v525 = vmul.f32 %v397, %v397
    %v526 = vmul.f32 %v402, %v402
    %v527 = vmul.f32 %v407, %v407
    %v528 = vmul.f32 %v412, %v412
    %v529 = vmul.f32 %v417, %v417
    %v530 = vmul.f32 %v422, %v422
    %v531 = vmul.f32 %v427, %v427
    %v532 = vmul.f32 %v432, %v432
    %v533 = vmul.f32 %v437, %v437
    %v534 = vmul.f32 %v442, %v442
    %v535 = vmul.f32 %v447, %v447
    %v536 = vmul.f32 %v452, %v452
    %v537 = vsel %vm455, %v521, 0.0
    %538 = vadd.xlane.f32.xlu0 %v537
    %v539 = vpop.xlane.xlu0 %538
    %v540 = vsel %vm455, %v522, 0.0
    %541 = vadd.xlane.f32.xlu0 %v540
    %v542 = vpop.xlane.xlu0 %541
    %v543 = vsel %vm455, %v523, 0.0
    %544 = vadd.xlane.f32.xlu0 %v543
    %v545 = vpop.xlane.xlu0 %544
    %v546 = vsel %vm455, %v524, 0.0
    %547 = vadd.xlane.f32.xlu0 %v546
    %v548 = vpop.xlane.xlu0 %547
    %v549 = vsel %vm455, %v525, 0.0
    %550 = vadd.xlane.f32.xlu0 %v549
    %v551 = vpop.xlane.xlu0 %550
    %v552 = vsel %vm455, %v526, 0.0
    %553 = vadd.xlane.f32.xlu0 %v552
    %v554 = vpop.xlane.xlu0 %553
    %v555 = vsel %vm455, %v527, 0.0
    %556 = vadd.xlane.f32.xlu0 %v555
    %v557 = vpop.xlane.xlu0 %556
    %v558 = vsel %vm455, %v528, 0.0
    %559 = vadd.xlane.f32.xlu0 %v558
    %v560 = vpop.xlane.xlu0 %559
    %v561 = vsel %vm455, %v529, 0.0
    %562 = vadd.xlane.f32.xlu0 %v561
    %v563 = vpop.xlane.xlu0 %562
    %v564 = vsel %vm455, %v530, 0.0
    %565 = vadd.xlane.f32.xlu0 %v564
    %v566 = vpop.xlane.xlu0 %565
    %v567 = vsel %vm455, %v531, 0.0
    %568 = vadd.xlane.f32.xlu0 %v567
    %v569 = vpop.xlane.xlu0 %568
    %v570 = vsel %vm455, %v532, 0.0
    %571 = vadd.xlane.f32.xlu0 %v570
    %v572 = vpop.xlane.xlu0 %571
    %v573 = vsel %vm455, %v533, 0.0
    %574 = vadd.xlane.f32.xlu0 %v573
    %v575 = vpop.xlane.xlu0 %574
    %v576 = vsel %vm455, %v534, 0.0
    %577 = vadd.xlane.f32.xlu0 %v576
    %v578 = vpop.xlane.xlu0 %577
    %v579 = vsel %vm455, %v535, 0.0
    %580 = vadd.xlane.f32.xlu0 %v579
    %v581 = vpop.xlane.xlu0 %580
    %v582 = vsel %vm455, %v536, 0.0
    %583 = vadd.xlane.f32.xlu0 %v582
    %v584 = vpop.xlane.xlu0 %583
    %v585 = vmul.f32 %v539, %v504
    %v586 = vmul.f32 %v542, %v504
    %v587 = vmul.f32 %v545, %v504
    %v588 = vmul.f32 %v548, %v504
    %v589 = vmul.f32 %v551, %v504
    %v590 = vmul.f32 %v554, %v504
    %v591 = vmul.f32 %v557, %v504
    %v592 = vmul.f32 %v560, %v504
    %v593 = vmul.f32 %v563, %v504
    %v594 = vmul.f32 %v566, %v504
    %v595 = vmul.f32 %v569, %v504
    %v596 = vmul.f32 %v572, %v504
    %v597 = vmul.f32 %v575, %v504
    %v598 = vmul.f32 %v578, %v504
    %v599 = vmul.f32 %v581, %v504
    %v600 = vmul.f32 %v584, %v504
    %v601 = vmul.f32 %v505, %v505
    %v602 = vmul.f32 %v506, %v506
    %v603 = vmul.f32 %v507, %v507
    %v604 = vmul.f32 %v508, %v508
    %v605 = vmul.f32 %v509, %v509
    %v606 = vmul.f32 %v510, %v510
    %v607 = vmul.f32 %v511, %v511
    %v608 = vmul.f32 %v512, %v512
    %v609 = vmul.f32 %v513, %v513
    %v610 = vmul.f32 %v514, %v514
    %v611 = vmul.f32 %v515, %v515
    %v612 = vmul.f32 %v516, %v516
    %v613 = vmul.f32 %v517, %v517
    %v614 = vmul.f32 %v518, %v518
    %v615 = vmul.f32 %v519, %v519
    %v616 = vmul.f32 %v520, %v520
    %v617 = vsub.f32 %v585, %v601
    %v618 = vsub.f32 %v586, %v602
    %v619 = vsub.f32 %v587, %v603
    %v620 = vsub.f32 %v588, %v604
    %v621 = vsub.f32 %v589, %v605
    %v622 = vsub.f32 %v590, %v606
    %v623 = vsub.f32 %v591, %v607
    %v624 = vsub.f32 %v592, %v608
    %v625 = vsub.f32 %v593, %v609
    %v626 = vsub.f32 %v594, %v610
    %v627 = vsub.f32 %v595, %v611
    %v628 = vsub.f32 %v596, %v612
    %v629 = vsub.f32 %v597, %v613
    %v630 = vsub.f32 %v598, %v614
    %v631 = vsub.f32 %v599, %v615
    %v632 = vsub.f32 %v600, %v616
    %v633 = vmax.f32 %v617, 0.0
    %v634 = vmax.f32 %v618, 0.0
    %v635 = vmax.f32 %v619, 0.0
    %v636 = vmax.f32 %v620, 0.0
    %v637 = vmax.f32 %v621, 0.0
    %v638 = vmax.f32 %v622, 0.0
    %v639 = vmax.f32 %v623, 0.0
    %v640 = vmax.f32 %v624, 0.0
    %v641 = vmax.f32 %v625, 0.0
    %v642 = vmax.f32 %v626, 0.0
    %v643 = vmax.f32 %v627, 0.0
    %v644 = vmax.f32 %v628, 0.0
    %v645 = vmax.f32 %v629, 0.0
    %v646 = vmax.f32 %v630, 0.0
    %v647 = vmax.f32 %v631, 0.0
    %v648 = vmax.f32 %v632, 0.0
    %v649 = vadd.f32 %v633, 1e-05
    %v650 = vadd.f32 %v634, 1e-05
    %v651 = vadd.f32 %v635, 1e-05
    %v652 = vadd.f32 %v636, 1e-05
    %v653 = vadd.f32 %v637, 1e-05
    %v654 = vadd.f32 %v638, 1e-05
    %v655 = vadd.f32 %v639, 1e-05
    %v656 = vadd.f32 %v640, 1e-05
    %v657 = vadd.f32 %v641, 1e-05
    %v658 = vadd.f32 %v642, 1e-05
    %v659 = vadd.f32 %v643, 1e-05
    %v660 = vadd.f32 %v644, 1e-05
    %v661 = vadd.f32 %v645, 1e-05
    %v662 = vadd.f32 %v646, 1e-05
    %v663 = vadd.f32 %v647, 1e-05
    %v664 = vadd.f32 %v648, 1e-05
    %v665 = vrsqrt.pop %v649
    %v666 = vrsqrt.pop %v650
    %v667 = vrsqrt.pop %v651
    %v668 = vrsqrt.pop %v652
    %v669 = vrsqrt.pop %v653
    %v670 = vrsqrt.pop %v654
    %v671 = vrsqrt.pop %v655
    %v672 = vrsqrt.pop %v656
    %v673 = vrsqrt.pop %v657
    %v674 = vrsqrt.pop %v658
    %v675 = vrsqrt.pop %v659
    %v676 = vrsqrt.pop %v660
    %v677 = vrsqrt.pop %v661
    %v678 = vrsqrt.pop %v662
    %v679 = vrsqrt.pop %v663
    %v680 = vrsqrt.pop %v664
    %v681 = vsub.f32 %v377, %v505
    %v682 = vsub.f32 %v382, %v506
    %v683 = vsub.f32 %v387, %v507
    %v684 = vsub.f32 %v392, %v508
    %v685 = vsub.f32 %v397, %v509
    %v686 = vsub.f32 %v402, %v510
    %v687 = vsub.f32 %v407, %v511
    %v688 = vsub.f32 %v412, %v512
    %v689 = vsub.f32 %v417, %v513
    %v690 = vsub.f32 %v422, %v514
    %v691 = vsub.f32 %v427, %v515
    %v692 = vsub.f32 %v432, %v516
    %v693 = vsub.f32 %v437, %v517
    %v694 = vsub.f32 %v442, %v518
    %v695 = vsub.f32 %v447, %v519
    %v696 = vsub.f32 %v452, %v520
    %v697 = vld [vmem:[%s5] sm:$0x1]
    %v699 = vlaneseq
    %v700 = vshrl.u32 %v699, 7
    %v701 = vsub.s32 0, %v700
    %v702 = vrot.slane %v697, %v701
    %v704 = vmul.f32 %v665, %v702
    %v705 = vmul.f32 %v666, %v702
    %v706 = vmul.f32 %v667, %v702
    %v707 = vmul.f32 %v668, %v702
    %v708 = vmul.f32 %v669, %v702
    %v709 = vmul.f32 %v670, %v702
    %v710 = vmul.f32 %v671, %v702
    %v711 = vmul.f32 %v672, %v702
    %v712 = vmul.f32 %v673, %v702
    %v713 = vmul.f32 %v674, %v702
    %v714 = vmul.f32 %v675, %v702
    %v715 = vmul.f32 %v676, %v702
    %v716 = vmul.f32 %v677, %v702
    %v717 = vmul.f32 %v678, %v702
    %v718 = vmul.f32 %v679, %v702
    %v719 = vmul.f32 %v680, %v702
    %v720 = vmul.f32 %v681, %v704
    %v721 = vmul.f32 %v682, %v705
    %v722 = vmul.f32 %v683, %v706
    %v723 = vmul.f32 %v684, %v707
    %v724 = vmul.f32 %v685, %v708
    %v725 = vmul.f32 %v686, %v709
    %v726 = vmul.f32 %v687, %v710
    %v727 = vmul.f32 %v688, %v711
    %v728 = vmul.f32 %v689, %v712
    %v729 = vmul.f32 %v690, %v713
    %v730 = vmul.f32 %v691, %v714
    %v731 = vmul.f32 %v692, %v715
    %v732 = vmul.f32 %v693, %v716
    %v733 = vmul.f32 %v694, %v717
    %v734 = vmul.f32 %v695, %v718
    %v735 = vmul.f32 %v696, %v719
    %v736 = vld [vmem:[%s6] sm:$0x1]
    %v738 = vlaneseq
    %v739 = vshrl.u32 %v738, 7
    %v740 = vsub.s32 0, %v739
    %v741 = vrot.slane %v736, %v740
    %v743 = vadd.f32 %v720, %v741
    %v744 = vadd.f32 %v721, %v741
    %v745 = vadd.f32 %v722, %v741
    %v746 = vadd.f32 %v723, %v741
    %v747 = vadd.f32 %v724, %v741
    %v748 = vadd.f32 %v725, %v741
    %v749 = vadd.f32 %v726, %v741
    %v750 = vadd.f32 %v727, %v741
    %v751 = vadd.f32 %v728, %v741
    %v752 = vadd.f32 %v729, %v741
    %v753 = vadd.f32 %v730, %v741
    %v754 = vadd.f32 %v731, %v741
    %v755 = vadd.f32 %v732, %v741
    %v756 = vadd.f32 %v733, %v741
    %v757 = vadd.f32 %v734, %v741
    %v758 = vadd.f32 %v735, %v741
    %v759 = vmul.f32 %v743, 0.2
    %v760 = vmul.f32 %v744, 0.2
    %v761 = vmul.f32 %v745, 0.2
    %v762 = vmul.f32 %v746, 0.2
    %v763 = vmul.f32 %v747, 0.2
    %v764 = vmul.f32 %v748, 0.2
    %v765 = vmul.f32 %v749, 0.2
    %v766 = vmul.f32 %v750, 0.2
    %v767 = vmul.f32 %v751, 0.2
    %v768 = vmul.f32 %v752, 0.2
    %v769 = vmul.f32 %v753, 0.2
    %v770 = vmul.f32 %v754, 0.2
    %v771 = vmul.f32 %v755, 0.2
    %v772 = vmul.f32 %v756, 0.2
    %v773 = vmul.f32 %v757, 0.2
    %v774 = vmul.f32 %v758, 0.2
    %v775 = vmax.f32 %v743, %v759
    %v776 = vmax.f32 %v744, %v760
    %v777 = vmax.f32 %v745, %v761
    %v778 = vmax.f32 %v746, %v762
    %v779 = vmax.f32 %v747, %v763
    %v780 = vmax.f32 %v748, %v764
    %v781 = vmax.f32 %v749, %v765
    %v782 = vmax.f32 %v750, %v766
    %v783 = vmax.f32 %v751, %v767
    %v784 = vmax.f32 %v752, %v768
    %v785 = vmax.f32 %v753, %v769
    %v786 = vmax.f32 %v754, %v770
    %v787 = vmax.f32 %v755, %v771
    %v788 = vmax.f32 %v756, %v772
    %v789 = vmax.f32 %v757, %v773
    %v790 = vmax.f32 %v758, %v774
    %v791 = vld [vmem:[%s7] sm:$0x1]
    %s792 = sld [smem:[#allocation2]]
    %v793 = vstv %s792
    %v795 = vsel %vm455, %v791, 0
    %v798 = vsel %vm455, %v775, 0
    %v801 = vsel %vm455, %v776, 0
    %v804 = vsel %vm455, %v777, 0
    %v807 = vsel %vm455, %v778, 0
    %v810 = vsel %vm455, %v779, 0
    %v813 = vsel %vm455, %v780, 0
    %v816 = vsel %vm455, %v781, 0
    %v819 = vsel %vm455, %v782, 0
    %v822 = vsel %vm455, %v783, 0
    %v825 = vsel %vm455, %v784, 0
    %v828 = vsel %vm455, %v785, 0
    %v831 = vsel %vm455, %v786, 0
    %v834 = vsel %vm455, %v787, 0
    %v837 = vsel %vm455, %v788, 0
    %v840 = vsel %vm455, %v789, 0
    %v843 = vsel %vm455, %v790, 0
    %845 = vmatprep.subr.mxu0 0.0
    %846 = vmatpush1.xpose.msra.mxu0 %v798
    %847 = vmatprep.subr.mxu0 0.0
    %848 = vmatpush1.xpose.msra.mxu0 %v801
    %849 = vmatprep.subr.mxu0 0.0
    %850 = vmatpush1.xpose.msra.mxu0 %v804
    %851 = vmatprep.subr.mxu0 0.0
    %852 = vmatpush1.xpose.msra.mxu0 %v807
    %853 = vmatprep.subr.mxu0 0.0
    %854 = vmatpush1.xpose.msra.mxu0 %v810
    %855 = vmatprep.subr.mxu0 0.0
    %856 = vmatpush1.xpose.msra.mxu0 %v813
    %857 = vmatprep.subr.mxu0 0.0
    %858 = vmatpush1.xpose.msra.mxu0 %v816
    %859 = vmatprep.subr.mxu0 0.0
    %860 = vmatpush1.xpose.msra.mxu0 %v819
    %861 = vmatprep.subr.mxu0 0.0
    %862 = vmatpush1.xpose.msra.mxu0 %v822
    %863 = vmatprep.subr.mxu0 0.0
    %864 = vmatpush1.xpose.msra.mxu0 %v825
    %865 = vmatprep.subr.mxu0 0.0
    %866 = vmatpush1.xpose.msra.mxu0 %v828
    %867 = vmatprep.subr.mxu0 0.0
    %868 = vmatpush1.xpose.msra.mxu0 %v831
    %869 = vmatprep.subr.mxu0 0.0
    %870 = vmatpush1.xpose.msra.mxu0 %v834
    %871 = vmatprep.subr.mxu0 0.0
    %872 = vmatpush1.xpose.msra.mxu0 %v837
    %873 = vmatprep.subr.mxu0 0.0
    %874 = vmatpush1.xpose.msra.mxu0 %v840
    %875 = vmatprep.subr.mxu0 0.0
    %876 = vmatpush1.xpose.msra.mxu0 %v843
    %877 = vmatprep.subr.mxu0 0.0
    %878 = vmatpush1.xpose.msra.mxu0 0.0
    %879 = vmatprep.subr.mxu0 0.0
    %880 = vmatpush1.xpose.msra.mxu0 0.0
    %881 = vmatprep.subr.mxu0 0.0
    %882 = vmatpush1.xpose.msra.mxu0 0.0
    %883 = vmatprep.subr.mxu0 0.0
    %884 = vmatpush1.xpose.msra.mxu0 0.0
    %885 = vmatprep.subr.mxu0 0.0
    %886 = vmatpush1.xpose.msra.mxu0 0.0
    %887 = vmatprep.subr.mxu0 0.0
    %888 = vmatpush1.xpose.msra.mxu0 0.0
    %889 = vmatprep.subr.mxu0 0.0
    %890 = vmatpush1.xpose.msra.mxu0 0.0
    %891 = vmatprep.subr.mxu0 0.0
    %892 = vmatpush1.xpose.msra.mxu0 0.0
    %893 = vmatprep.subr.mxu0 0.0
    %894 = vmatpush1.xpose.msra.mxu0 0.0
    %895 = vmatprep.subr.mxu0 0.0
    %896 = vmatpush1.xpose.msra.mxu0 0.0
    %897 = vmatprep.subr.mxu0 0.0
    %898 = vmatpush1.xpose.msra.mxu0 0.0
    %899 = vmatprep.subr.mxu0 0.0
    %900 = vmatpush1.xpose.msra.mxu0 0.0
    %901 = vmatprep.subr.mxu0 0.0
    %902 = vmatpush1.xpose.msra.mxu0 0.0
    %903 = vmatprep.subr.mxu0 0.0
    %904 = vmatpush1.xpose.msra.mxu0 0.0
    %905 = vmatprep.subr.mxu0 0.0
    %906 = vmatpush1.xpose.msra.mxu0 0.0
    %907 = vmatprep.subr.mxu0 0.0
    %908 = vmatpush1.xpose.msra.mxu0 0.0
    %909 = vmatprep.mubr.f32.mxu0 0.0
    %910 = vmatmul.mubr.f32.gmra.mrb[0].mxu0 %v795
    %v911 = vpop.f32.mrb[0].mxu0
    %v912 = vadd.f32 %v793, %v911
    %v913 = vpop.f32.mrb[0].mxu0
    %914 = vdwg.mxu0
    %v915 = vxor.u32 %v912, 2147483648
    %v916 = vmul.f32 %v915, 1.442695
    %v917 = vpow.pop %v916
    %v918 = vadd.f32 %v917, 1.0
    %v919 = vrcp.pop %v918
    %v920 = vmul.f32 1.0, %v919
    %921 = vst [vmem:[#allocation3] sm:$0x1] %v920
    // Predicated region
    $region38: #{tpu_custom_call.1} parent=1 // pred_check
      _
    $region39: #{tpu_custom_call.1} parent=1 // pred_check_branch
      %923 = sbr.rel (0) target = $region41
    $region40: #{tpu_custom_call.1} parent=1 // pred_region
      %s925 = ssub.s32 16, 16
      %926 = vsyncadd [#allocation4], %s925
      %s928 = sshll.u32 [#allocation3], 4
      %s929 = int_to_ptr.vmem [resolvable:$true] %s928
      %931 = dma.vmem_to_hbm [thread:$0]  %s929, 16, %s9, [#allocation4]
    $region41: #{tpu_custom_call.1} parent=1 // pred_fallthru
      _
    // Predicated region
    $region42: #{tpu_custom_call.1} parent=1 // pred_check
      _
    $region43: #{tpu_custom_call.1} parent=1 // pred_check_branch
      %933 = sbr.rel (0) target = $region45
    $region44: #{tpu_custom_call.1} parent=1 // pred_region
      %934 = dma.done [#allocation4], 16
    $region45: #{tpu_custom_call.1} parent=1 // pred_fallthru
      _
    %935 = vsyncpa [#allocation4], 1

</llo_original>
